<compile_context>
chip_gen: v7x
topology: tpu7x:2x2x1
jax: 0.10.0
libtpu: 0.0.40
codegen_flags: <defaults>
</compile_context>

<pallas_src>
import jax
import jax.numpy as jnp
from jax.experimental import pallas as pl
from jax.experimental.pallas import tpu as pltpu

_LANE = 128
_MAX_BATCH_TILE = 4096   # sweep 1024-8192 if tuning further; VMEM use stays tiny.


def _elu(x):
    # nn.ELU(alpha=1.0). The exp is evaluated on min(x, 0) so the discarded branch
    # never produces a transient inf. exp(.)-1 (vs expm1) deviates by <= ~1.2e-7 abs
    # near 0 and is guaranteed to lower on every TPU generation.
    return jnp.where(x > 0, x, jnp.exp(jnp.minimum(x, 0.0)) - 1.0)


def odefunc_kernel(xt_ref, w1_ref, b1_ref, w2_ref, b2_ref, w3_ref, b3_ref, o_ref):
    f32 = jnp.float32
    # Feed the MXU bf16 operands only when *all* weights are bf16; otherwise stay f32
    # (f32 accumulation either way; bias adds + ELUs always run in f32 on the VPU/EUP).
    all_bf16 = all(r.dtype == jnp.bfloat16 for r in (w1_ref, w2_ref, w3_ref))
    mx = jnp.bfloat16 if all_bf16 else jnp.float32

    xt = xt_ref[...].astype(mx)                                  # (dim, bt), batch on lanes

    # All three matmuls go to the MXU (its slot is otherwise idle at these shapes);
    # Mosaic pads the tiny dim/nhidden contractions to native tiles.
    # TODO(synk): for strict f32 parity at large nhidden, pass
    # precision=jax.lax.Precision.HIGHEST to these dots.
    h = jnp.dot(w1_ref[...].astype(mx), xt, preferred_element_type=f32)
    h = _elu(h + b1_ref[...].astype(f32))                        # (nhidden, bt)

    h = jnp.dot(w2_ref[...].astype(mx), h.astype(mx), preferred_element_type=f32)
    h = _elu(h + b2_ref[...].astype(f32))                        # (nhidden, bt)

    out = jnp.dot(w3_ref[...].astype(mx), h.astype(mx), preferred_element_type=f32)
    o_ref[...] = (out + b3_ref[...].astype(f32)).astype(o_ref.dtype)


def _cdiv(a, b):
    return -(-a // b)


def _round_up(x, m):
    return _cdiv(x, m) * m


def _num_tensorcores():
    """Best-effort TensorCore count of the local chip (v7x: 2, v5e/v6e: 1)."""
    try:
        info = pltpu.get_tpu_info()
        for name in ("num_cores", "core_count", "num_tensorcores", "tensorcore_count"):
            v = getattr(info, name, None)
            if v:
                return int(v)
    except Exception:
        pass
    try:
        kind = jax.devices()[0].device_kind.lower()
        if "v7" in kind or "7x" in kind:
            return 2
    except Exception:
        pass
    return 1


def _choose_batch_tile(bp, max_tile=_MAX_BATCH_TILE):
    """Lane-multiple batch tile minimizing grid steps (1 per TensorCore when possible)."""
    if bp <= _LANE:
        return bp                                   # single (possibly lane-masked) block
    n_tiles = max(_num_tensorcores(), _cdiv(bp, max_tile))
    bt = _round_up(_cdiv(bp, n_tiles), _LANE)
    return min(bt, bp)


def odefunc_forward_t(xt, params, *, batch_tile=None):
    """ODEfunc forward on the lane-dense transposed state: xt (dim, B) -> (dim, B).

    Preferred entry point inside an ODE solver loop: keep the state persistently in
    (dim, B) layout (transpose once at the solve boundary) so each evaluation is a
    single pallas_call with no per-call transpose / pad / slice ops. Lane-align B
    (multiple of 128) for unmasked output stores.  The `t` argument of the PyTorch
    module is unused by the computation and therefore omitted here.
    """
    w1, b1, w2, b2, w3, b3 = params
    dim, bp = xt.shape
    nhidden = w1.shape[0]

    bt = batch_tile if batch_tile is not None else _choose_batch_tile(bp)
    grid = (_cdiv(bp, bt),)

    # Biases as columns so they broadcast along the lane (batch) axis in-kernel.
    # (Tiny reshapes; hoisted/constant-folded by XLA when params are loop-invariant.)
    b1c, b2c, b3c = b1.reshape(-1, 1), b2.reshape(-1, 1), b3.reshape(-1, 1)

    full = lambda shape: pl.BlockSpec(shape, lambda i: (0, 0))   # grid-invariant blocks

    param_bytes = sum(int(p.size) * p.dtype.itemsize for p in (w1, b1, w2, b2, w3, b3))
    cost = pl.CostEstimate(
        flops=2 * bp * (dim * nhidden + nhidden * nhidden + nhidden * dim),
        transcendentals=2 * bp * nhidden,                        # two ELU exp evaluations
        bytes_accessed=2 * dim * bp * xt.dtype.itemsize + param_bytes,
    )

    return pl.pallas_call(
        odefunc_kernel,
        out_shape=jax.ShapeDtypeStruct((dim, bp), xt.dtype),
        grid_spec=pltpu.PrefetchScalarGridSpec(
            num_scalar_prefetch=0,
            grid=grid,
            in_specs=[
                pl.BlockSpec((dim, bt), lambda i: (0, i)),       # x^T tile (lane-dense)
                full((nhidden, dim)),                            # W1 (out, in)
                full((nhidden, 1)),                              # b1
                full((nhidden, nhidden)),                        # W2
                full((nhidden, 1)),                              # b2
                full((dim, nhidden)),                            # W3
                full((dim, 1)),                                  # b3
            ],
            out_specs=pl.BlockSpec((dim, bt), lambda i: (0, i)),
        ),
        compiler_params=pltpu.CompilerParams(
            dimension_semantics=("parallel",),                   # shards grid across v7x TCs
        ),
        cost_estimate=cost,
    )(xt, w1, b1c, w2, b2c, w3, b3c)


def odefunc_forward(x, params, *, batch_tile=None):
    """PyTorch-layout convenience wrapper: x (B, dim) -> (B, dim).

    The per-call transpose / pad / slice here are separate XLA ops of the same order
    of magnitude as the kernel itself at these shapes; inside a solver loop prefer
    `odefunc_forward_t` with a persistently transposed state.
    """
    B, dim = x.shape
    bp = max(_LANE, _round_up(B, _LANE))    # lane-align so output stores are unmasked
    xt = x.T
    if bp != B:
        xt = jnp.pad(xt, ((0, 0), (0, bp - B)))
    out_t = odefunc_forward_t(xt, params, batch_tile=batch_tile)
    return out_t[:, :B].T


def init_params(key, dim, nhidden, dtype=jnp.float32):
    """nn.Linear-style init, PyTorch layout: W is (out, in), b is (out,)."""
    ks = jax.random.split(key, 6)

    def linear(kw, kb, fan_in, fan_out):
        bound = float(fan_in) ** -0.5
        w = jax.random.uniform(kw, (fan_out, fan_in), dtype, -bound, bound)
        b = jax.random.uniform(kb, (fan_out,), dtype, -bound, bound)
        return w, b

    w1, b1 = linear(ks[0], ks[1], dim, nhidden)
    w2, b2 = linear(ks[2], ks[3], nhidden, nhidden)
    w3, b3 = linear(ks[4], ks[5], nhidden, dim)
    return (w1, b1, w2, b2, w3, b3)


def odefunc_reference(x, params):
    w1, b1, w2, b2, w3, b3 = params
    h = jax.nn.elu(x @ w1.T + b1)
    h = jax.nn.elu(h @ w2.T + b2)
    return h @ w3.T + b3


if __name__ == "__main__":
    dim, nhidden = 4, 32

    key = jax.random.PRNGKey(0)
    k_x, k_p = jax.random.split(key)
    params = init_params(k_p, dim, nhidden)

    t = jnp.float32(0.0)  # ODEfunc.forward(t, x): t is unused by the computation.
    # TODO(synk): self.nfe is Python-side call counting in the PyTorch module; no tensor op.

    # Preferred solver-loop path: state kept persistently in lane-dense (dim, B) layout.
    xt = jax.random.normal(k_x, (dim, 256), jnp.float32)
    out_t = jax.block_until_ready(odefunc_forward_t(xt, params))
    ref_t = odefunc_reference(xt.T, params).T
    assert out_t.shape == (dim, 256)
    assert jnp.allclose(out_t, ref_t, atol=1e-4, rtol=1e-4), "mismatch (transposed path)"

    # PyTorch-layout convenience path: multi-tile, ragged (padded) and tiny-batch cases.
    for batch in (512, 300, 8):
        x = jax.random.normal(jax.random.fold_in(k_x, batch), (batch, dim), jnp.float32)
        out = jax.block_until_ready(odefunc_forward(x, params))
        ref = odefunc_reference(x, params)
        assert out.shape == (batch, dim)
        assert jnp.allclose(out, ref, atol=1e-4, rtol=1e-4), f"mismatch at batch={batch}"

    print("KERNEL_OK")
</pallas_src>

<mosaic_0001>
module attributes {stable_mosaic.version = 11 : i64} {
  func.func @odefunc_kernel(%arg0: i32, %arg1: memref<4x256xf32, #tpu.memory_space<vmem>>, %arg2: memref<32x4xf32, #tpu.memory_space<vmem>>, %arg3: memref<32x1xf32, #tpu.memory_space<vmem>>, %arg4: memref<32x32xf32, #tpu.memory_space<vmem>>, %arg5: memref<32x1xf32, #tpu.memory_space<vmem>>, %arg6: memref<4x32xf32, #tpu.memory_space<vmem>>, %arg7: memref<4x1xf32, #tpu.memory_space<vmem>>, %arg8: memref<4x256xf32, #tpu.memory_space<vmem>>) attributes {dimension_semantics = [#tpu.dimension_semantics<parallel>], iteration_bounds = array<i64: 1>, scalar_prefetch = 0 : i64, scratch_operands = 0 : i64, tpu.core_type = #tpu.core_type<tc>, window_params = [{transform_indices = @transform_0, window_bounds = array<i64: 4, 256>}, {pipeline_mode = #tpu.pipeline_mode<synchronous>, transform_indices = @transform_1, window_bounds = array<i64: 32, 4>}, {pipeline_mode = #tpu.pipeline_mode<synchronous>, transform_indices = @transform_2, window_bounds = array<i64: 32, 1>}, {pipeline_mode = #tpu.pipeline_mode<synchronous>, transform_indices = @transform_3, window_bounds = array<i64: 32, 32>}, {pipeline_mode = #tpu.pipeline_mode<synchronous>, transform_indices = @transform_4, window_bounds = array<i64: 32, 1>}, {pipeline_mode = #tpu.pipeline_mode<synchronous>, transform_indices = @transform_5, window_bounds = array<i64: 4, 32>}, {pipeline_mode = #tpu.pipeline_mode<synchronous>, transform_indices = @transform_6, window_bounds = array<i64: 4, 1>}, {transform_indices = @transform_7, window_bounds = array<i64: 4, 256>}]} {
    %c0 = arith.constant 0 : index
    %c0_0 = arith.constant 0 : index
    %0 = vector.load %arg1[%c0, %c0_0] : memref<4x256xf32, #tpu.memory_space<vmem>>, vector<4x256xf32>
    %c0_1 = arith.constant 0 : index
    %c0_2 = arith.constant 0 : index
    %1 = vector.load %arg2[%c0_1, %c0_2] : memref<32x4xf32, #tpu.memory_space<vmem>>, vector<32x4xf32>
    %cst = arith.constant dense<0.000000e+00> : vector<32x256xf32>
    %2 = tpu.matmul %1, %0, %cst {dimension_numbers = #tpu.dot_dimension_numbers<[1], [0], [0], [1], [0, 0, 1, 1], [], []>} : vector<32x4xf32>, vector<4x256xf32>, vector<32x256xf32> -> vector<32x256xf32>
    %c0_3 = arith.constant 0 : index
    %c0_4 = arith.constant 0 : index
    %3 = vector.load %arg3[%c0_3, %c0_4] : memref<32x1xf32, #tpu.memory_space<vmem>>, vector<32x1xf32>
    %4 = vector.broadcast %3 : vector<32x1xf32> to vector<32x256xf32>
    %5 = arith.addf %2, %4 : vector<32x256xf32>
    %cst_5 = arith.constant 0.000000e+00 : f32
    %6 = vector.broadcast %cst_5 : f32 to vector<32x256xf32>
    %7 = arith.cmpf ogt, %5, %6 : vector<32x256xf32>
    %cst_6 = arith.constant 0.000000e+00 : f32
    %8 = vector.broadcast %cst_6 : f32 to vector<32x256xf32>
    %9 = arith.minimumf %5, %8 : vector<32x256xf32>
    %10 = math.exp %9 : vector<32x256xf32>
    %cst_7 = arith.constant 1.000000e+00 : f32
    %11 = vector.broadcast %cst_7 : f32 to vector<32x256xf32>
    %12 = arith.subf %10, %11 : vector<32x256xf32>
    %13 = arith.select %7, %5, %12 : vector<32x256xi1>, vector<32x256xf32>
    %c0_8 = arith.constant 0 : index
    %c0_9 = arith.constant 0 : index
    %14 = vector.load %arg4[%c0_8, %c0_9] : memref<32x32xf32, #tpu.memory_space<vmem>>, vector<32x32xf32>
    %cst_10 = arith.constant dense<0.000000e+00> : vector<32x256xf32>
    %15 = tpu.matmul %14, %13, %cst_10 {dimension_numbers = #tpu.dot_dimension_numbers<[1], [0], [0], [1], [0, 0, 1, 1], [], []>} : vector<32x32xf32>, vector<32x256xf32>, vector<32x256xf32> -> vector<32x256xf32>
    %c0_11 = arith.constant 0 : index
    %c0_12 = arith.constant 0 : index
    %16 = vector.load %arg5[%c0_11, %c0_12] : memref<32x1xf32, #tpu.memory_space<vmem>>, vector<32x1xf32>
    %17 = vector.broadcast %16 : vector<32x1xf32> to vector<32x256xf32>
    %18 = arith.addf %15, %17 : vector<32x256xf32>
    %cst_13 = arith.constant 0.000000e+00 : f32
    %19 = vector.broadcast %cst_13 : f32 to vector<32x256xf32>
    %20 = arith.cmpf ogt, %18, %19 : vector<32x256xf32>
    %cst_14 = arith.constant 0.000000e+00 : f32
    %21 = vector.broadcast %cst_14 : f32 to vector<32x256xf32>
    %22 = arith.minimumf %18, %21 : vector<32x256xf32>
    %23 = math.exp %22 : vector<32x256xf32>
    %cst_15 = arith.constant 1.000000e+00 : f32
    %24 = vector.broadcast %cst_15 : f32 to vector<32x256xf32>
    %25 = arith.subf %23, %24 : vector<32x256xf32>
    %26 = arith.select %20, %18, %25 : vector<32x256xi1>, vector<32x256xf32>
    %c0_16 = arith.constant 0 : index
    %c0_17 = arith.constant 0 : index
    %27 = vector.load %arg6[%c0_16, %c0_17] : memref<4x32xf32, #tpu.memory_space<vmem>>, vector<4x32xf32>
    %cst_18 = arith.constant dense<0.000000e+00> : vector<4x256xf32>
    %28 = tpu.matmul %27, %26, %cst_18 {dimension_numbers = #tpu.dot_dimension_numbers<[1], [0], [0], [1], [0, 0, 1, 1], [], []>} : vector<4x32xf32>, vector<32x256xf32>, vector<4x256xf32> -> vector<4x256xf32>
    %c0_19 = arith.constant 0 : index
    %c0_20 = arith.constant 0 : index
    %29 = vector.load %arg7[%c0_19, %c0_20] : memref<4x1xf32, #tpu.memory_space<vmem>>, vector<4x1xf32>
    %30 = vector.broadcast %29 : vector<4x1xf32> to vector<4x256xf32>
    %31 = arith.addf %28, %30 : vector<4x256xf32>
    %c0_21 = arith.constant 0 : index
    %c0_22 = arith.constant 0 : index
    %32 = vector.load %arg8[%c0_21, %c0_22] : memref<4x256xf32, #tpu.memory_space<vmem>>, vector<4x256xf32>
    tpu.vector_store %arg8[%c0_21, %c0_22], %31 {strides = array<i32>} : memref<4x256xf32, #tpu.memory_space<vmem>>, vector<4x256xf32>,
    return
  }
  func.func @transform_0(%arg0: i32) -> (i32, i32) {
    %c0_i32 = arith.constant 0 : i32
    %c0_i32_0 = arith.constant 0 : i32
    return %c0_i32, %arg0 : i32, i32
  }
  func.func @transform_1(%arg0: i32) -> (i32, i32) {
    %c0_i32 = arith.constant 0 : i32
    %c0_i32_0 = arith.constant 0 : i32
    %c0_i32_1 = arith.constant 0 : i32
    return %c0_i32, %c0_i32_0 : i32, i32
  }
  func.func @transform_2(%arg0: i32) -> (i32, i32) {
    %c0_i32 = arith.constant 0 : i32
    %c0_i32_0 = arith.constant 0 : i32
    %c0_i32_1 = arith.constant 0 : i32
    return %c0_i32, %c0_i32_0 : i32, i32
  }
  func.func @transform_3(%arg0: i32) -> (i32, i32) {
    %c0_i32 = arith.constant 0 : i32
    %c0_i32_0 = arith.constant 0 : i32
    %c0_i32_1 = arith.constant 0 : i32
    return %c0_i32, %c0_i32_0 : i32, i32
  }
  func.func @transform_4(%arg0: i32) -> (i32, i32) {
    %c0_i32 = arith.constant 0 : i32
    %c0_i32_0 = arith.constant 0 : i32
    %c0_i32_1 = arith.constant 0 : i32
    return %c0_i32, %c0_i32_0 : i32, i32
  }
  func.func @transform_5(%arg0: i32) -> (i32, i32) {
    %c0_i32 = arith.constant 0 : i32
    %c0_i32_0 = arith.constant 0 : i32
    %c0_i32_1 = arith.constant 0 : i32
    return %c0_i32, %c0_i32_0 : i32, i32
  }
  func.func @transform_6(%arg0: i32) -> (i32, i32) {
    %c0_i32 = arith.constant 0 : i32
    %c0_i32_0 = arith.constant 0 : i32
    %c0_i32_1 = arith.constant 0 : i32
    return %c0_i32, %c0_i32_0 : i32, i32
  }
  func.func @transform_7(%arg0: i32) -> (i32, i32) {
    %c0_i32 = arith.constant 0 : i32
    %c0_i32_0 = arith.constant 0 : i32
    return %c0_i32, %arg0 : i32, i32
  }
}

</mosaic_0001>

<llo_original>
// kernel: tpu_custom_call.1
$region0: #{tpu_custom_call.1}
  #allocation0 [shape = 'u32[]', space=smem, size = 0x4, offset = 0x4, fixed_abs, tag = 'smem constant byte address 0x4 - core index']
  #allocation1 [shape = 'u32[144,128]{1,0:T(1,128)}', space=vmem, size = 0x12000, scoped, tag = 'internal scratch']
  %s0 = inlined_call_operand.vmem [shape: f32[4,256], index: 0, kind: input, shape index: {}]
  %s1 = inlined_call_operand.vmem [shape: f32[32,4], index: 1, kind: input, shape index: {}]
  %s2 = inlined_call_operand.vmem [shape: f32[32,1], index: 2, kind: input, shape index: {}]
  %s3 = inlined_call_operand.vmem [shape: f32[32,32], index: 3, kind: input, shape index: {}]
  %s4 = inlined_call_operand.vmem [shape: f32[32,1], index: 4, kind: input, shape index: {}]
  %s5 = inlined_call_operand.vmem [shape: f32[4,32], index: 5, kind: input, shape index: {}]
  %s6 = inlined_call_operand.vmem [shape: f32[4,1], index: 6, kind: input, shape index: {}]
  %s7 = inlined_call_operand.hbm [shape: f32[4,256], index: 7, kind: output, shape index: {}]
  %s8 = sld [smem:[#allocation0]]
  $region38: #{tpu_custom_call.1} parent=0
    _
  %s10 = ssub.s32 1, %s8
  %s11 = scalar_select 0, %s10, %s8
  $region1: #{tpu_custom_call.1} parent=0
    #allocation2 [shape = 'u8[4096]{0}', space=vmem, size = 0x1000, scoped, tag = 'output window, operand 0, single buffered']
    #allocation3 [shape = 's32[1]{0}', space=sflag, size = 0x4, scoped, tag = 'scoped memory for tpu_custom_call.1']
    %12 = vsyncpa [#allocation3], 0
    // Predicated region
    $region2: #{tpu_custom_call.1} parent=1 // pred_check
      _
    $region3: #{tpu_custom_call.1} parent=1 // pred_check_branch
      %14 = sbr.rel (0) target = $region5
    $region4: #{tpu_custom_call.1} parent=1 // pred_region
      _
    $region5: #{tpu_custom_call.1} parent=1 // pred_fallthru
      _
    // Predicated region
    $region6: #{tpu_custom_call.1} parent=1 // pred_check
      _
    $region7: #{tpu_custom_call.1} parent=1 // pred_check_branch
      %16 = sbr.rel (0) target = $region9
    $region8: #{tpu_custom_call.1} parent=1 // pred_region
      _
    $region9: #{tpu_custom_call.1} parent=1 // pred_fallthru
      _
    // Predicated region
    $region10: #{tpu_custom_call.1} parent=1 // pred_check
      _
    $region11: #{tpu_custom_call.1} parent=1 // pred_check_branch
      %18 = sbr.rel (0) target = $region13
    $region12: #{tpu_custom_call.1} parent=1 // pred_region
      _
    $region13: #{tpu_custom_call.1} parent=1 // pred_fallthru
      _
    // Predicated region
    $region14: #{tpu_custom_call.1} parent=1 // pred_check
      _
    $region15: #{tpu_custom_call.1} parent=1 // pred_check_branch
      %20 = sbr.rel (0) target = $region17
    $region16: #{tpu_custom_call.1} parent=1 // pred_region
      _
    $region17: #{tpu_custom_call.1} parent=1 // pred_fallthru
      _
    // Predicated region
    $region18: #{tpu_custom_call.1} parent=1 // pred_check
      _
    $region19: #{tpu_custom_call.1} parent=1 // pred_check_branch
      %22 = sbr.rel (0) target = $region21
    $region20: #{tpu_custom_call.1} parent=1 // pred_region
      _
    $region21: #{tpu_custom_call.1} parent=1 // pred_fallthru
      _
    // Predicated region
    $region22: #{tpu_custom_call.1} parent=1 // pred_check
      _
    $region23: #{tpu_custom_call.1} parent=1 // pred_check_branch
      %24 = sbr.rel (0) target = $region25
    $region24: #{tpu_custom_call.1} parent=1 // pred_region
      _
    $region25: #{tpu_custom_call.1} parent=1 // pred_fallthru
      _
    // Predicated region
    $region26: #{tpu_custom_call.1} parent=1 // pred_check
      _
    $region27: #{tpu_custom_call.1} parent=1 // pred_check_branch
      %26 = sbr.rel (0) target = $region29
    $region28: #{tpu_custom_call.1} parent=1 // pred_region
      _
    $region29: #{tpu_custom_call.1} parent=1 // pred_fallthru
      _
    %v27 = vld [vmem:[%s0] sm:$0xff]
    %v28 = vld [vmem:[%s1] sm:$0xff]
    %v29 = vld [vmem:[%s1 + $0x8] sm:$0xff]
    %v30 = vld [vmem:[%s1 + $0x10] sm:$0xff]
    %v31 = vld [vmem:[%s1 + $0x18] sm:$0xff]
    %v32 = vld [vmem:[%s2] sm:$0xff]
    %v33 = vld [vmem:[%s2 + $0x8] sm:$0xff]
    %v34 = vld [vmem:[%s2 + $0x10] sm:$0xff]
    %v35 = vld [vmem:[%s2 + $0x18] sm:$0xff]
    %37 = vset.pattern.permute.xlu0 0
    %38 = vperm.xlu0 %37, %v32
    %v39 = vpop.permute.xlu0 %38
    %42 = vset.pattern.permute.xlu0 0
    %43 = vperm.xlu0 %42, %v33
    %v44 = vpop.permute.xlu0 %43
    %47 = vset.pattern.permute.xlu0 0
    %48 = vperm.xlu0 %47, %v34
    %v49 = vpop.permute.xlu0 %48
    %52 = vset.pattern.permute.xlu0 0
    %53 = vperm.xlu0 %52, %v35
    %v54 = vpop.permute.xlu0 %53
    %v57 = vcombine.high %v27, %v27
    %vm58 = vcmask 31744
    %v60 = vsel %vm58, %v28, 0
    %v63 = vsel %vm58, %v29, 0
    %v66 = vsel %vm58, %v30, 0
    %v69 = vsel %vm58, %v31, 0
    %vm71 = vcmask 1043456
    %v72 = vsel %vm71, %v27, 0
    %v74 = vsel %vm71, %v57, 0
    %76 = vmatprep.subr.mxu0 %v74
    %77 = vmatpush1.msra.mxu0 %v72
    %78 = vmatprep.subr.mxu0 0.0
    %79 = vmatpush1.msra.mxu0 0.0
    %80 = vmatprep.subr.mxu0 0.0
    %81 = vmatpush1.msra.mxu0 0.0
    %82 = vmatprep.subr.mxu0 0.0
    %83 = vmatpush1.msra.mxu0 0.0
    %84 = vmatprep.subr.mxu0 0.0
    %85 = vmatpush1.msra.mxu0 0.0
    %86 = vmatprep.subr.mxu0 0.0
    %87 = vmatpush1.msra.mxu0 0.0
    %88 = vmatprep.subr.mxu0 0.0
    %89 = vmatpush1.msra.mxu0 0.0
    %90 = vmatprep.subr.mxu0 0.0
    %91 = vmatpush1.msra.mxu0 0.0
    %92 = vmatprep.subr.mxu0 0.0
    %93 = vmatpush1.msra.mxu0 0.0
    %94 = vmatprep.subr.mxu0 0.0
    %95 = vmatpush1.msra.mxu0 0.0
    %96 = vmatprep.subr.mxu0 0.0
    %97 = vmatpush1.msra.mxu0 0.0
    %98 = vmatprep.subr.mxu0 0.0
    %99 = vmatpush1.msra.mxu0 0.0
    %100 = vmatprep.subr.mxu0 0.0
    %101 = vmatpush1.msra.mxu0 0.0
    %102 = vmatprep.subr.mxu0 0.0
    %103 = vmatpush1.msra.mxu0 0.0
    %104 = vmatprep.subr.mxu0 0.0
    %105 = vmatpush1.msra.mxu0 0.0
    %106 = vmatprep.subr.mxu0 0.0
    %107 = vmatpush1.msra.mxu0 0.0
    %108 = vmatprep.subr.mxu0 0.0
    %109 = vmatpush1.msra.mxu0 0.0
    %110 = vmatprep.subr.mxu0 0.0
    %111 = vmatpush1.msra.mxu0 0.0
    %112 = vmatprep.subr.mxu0 0.0
    %113 = vmatpush1.msra.mxu0 0.0
    %114 = vmatprep.subr.mxu0 0.0
    %115 = vmatpush1.msra.mxu0 0.0
    %116 = vmatprep.subr.mxu0 0.0
    %117 = vmatpush1.msra.mxu0 0.0
    %118 = vmatprep.subr.mxu0 0.0
    %119 = vmatpush1.msra.mxu0 0.0
    %120 = vmatprep.subr.mxu0 0.0
    %121 = vmatpush1.msra.mxu0 0.0
    %122 = vmatprep.subr.mxu0 0.0
    %123 = vmatpush1.msra.mxu0 0.0
    %124 = vmatprep.subr.mxu0 0.0
    %125 = vmatpush1.msra.mxu0 0.0
    %126 = vmatprep.subr.mxu0 0.0
    %127 = vmatpush1.msra.mxu0 0.0
    %128 = vmatprep.subr.mxu0 0.0
    %129 = vmatpush1.msra.mxu0 0.0
    %130 = vmatprep.subr.mxu0 0.0
    %131 = vmatpush1.msra.mxu0 0.0
    %132 = vmatprep.subr.mxu0 0.0
    %133 = vmatpush1.msra.mxu0 0.0
    %134 = vmatprep.subr.mxu0 0.0
    %135 = vmatpush1.msra.mxu0 0.0
    %136 = vmatprep.subr.mxu0 0.0
    %137 = vmatpush1.msra.mxu0 0.0
    %138 = vmatprep.subr.mxu0 0.0
    %139 = vmatpush1.msra.mxu0 0.0
    %140 = vmatprep.mubr.f32.mxu0 0.0
    %141 = vmatmul.mubr.f32.gmra.mrb[0].mxu0 %v60
    %v142 = vpop.f32.mrb[0].mxu0
    %v143 = vadd.f32 %v39, %v142
    %v144 = vpop.f32.mrb[0].mxu0
    %v145 = vadd.f32 %v39, %v144
    %146 = vmatprep.mubr.f32.mxu0 0.0
    %147 = vmatmul.mubr.f32.gmra.mrb[0].mxu0 %v63
    %v148 = vpop.f32.mrb[0].mxu0
    %v149 = vadd.f32 %v44, %v148
    %v150 = vpop.f32.mrb[0].mxu0
    %v151 = vadd.f32 %v44, %v150
    %152 = vmatprep.mubr.f32.mxu0 0.0
    %153 = vmatmul.mubr.f32.gmra.mrb[0].mxu0 %v66
    %v154 = vpop.f32.mrb[0].mxu0
    %v155 = vadd.f32 %v49, %v154
    %v156 = vpop.f32.mrb[0].mxu0
    %v157 = vadd.f32 %v49, %v156
    %158 = vmatprep.mubr.f32.mxu0 0.0
    %159 = vmatmul.mubr.f32.gmra.mrb[0].mxu0 %v69
    %v160 = vpop.f32.mrb[0].mxu0
    %v161 = vadd.f32 %v54, %v160
    %v162 = vpop.f32.mrb[0].mxu0
    %v163 = vadd.f32 %v54, %v162
    %164 = vdwg.mxu0
    %vm165 = vcmp.gt.f32.partialorder %v143, 0.0
    %vm166 = vcmp.gt.f32.partialorder %v145, 0.0
    %vm167 = vcmp.gt.f32.partialorder %v149, 0.0
    %vm168 = vcmp.gt.f32.partialorder %v151, 0.0
    %vm169 = vcmp.gt.f32.partialorder %v155, 0.0
    %vm170 = vcmp.gt.f32.partialorder %v157, 0.0
    %vm171 = vcmp.gt.f32.partialorder %v161, 0.0
    %vm172 = vcmp.gt.f32.partialorder %v163, 0.0
    %v173 = vmin.f32 %v143, 0.0
    %v174 = vmin.f32 %v145, 0.0
    %v175 = vmin.f32 %v149, 0.0
    %v176 = vmin.f32 %v151, 0.0
    %v177 = vmin.f32 %v155, 0.0
    %v178 = vmin.f32 %v157, 0.0
    %v179 = vmin.f32 %v161, 0.0
    %v180 = vmin.f32 %v163, 0.0
    %v181 = vmul.f32 %v173, 1.442695
    %v182 = vpow.pop %v181
    %v183 = vmul.f32 %v174, 1.442695
    %v184 = vpow.pop %v183
    %v185 = vmul.f32 %v175, 1.442695
    %v186 = vpow.pop %v185
    %v187 = vmul.f32 %v176, 1.442695
    %v188 = vpow.pop %v187
    %v189 = vmul.f32 %v177, 1.442695
    %v190 = vpow.pop %v189
    %v191 = vmul.f32 %v178, 1.442695
    %v192 = vpow.pop %v191
    %v193 = vmul.f32 %v179, 1.442695
    %v194 = vpow.pop %v193
    %v195 = vmul.f32 %v180, 1.442695
    %v196 = vpow.pop %v195
    %v197 = vsub.f32 %v182, 1.0
    %v198 = vsub.f32 %v184, 1.0
    %v199 = vsub.f32 %v186, 1.0
    %v200 = vsub.f32 %v188, 1.0
    %v201 = vsub.f32 %v190, 1.0
    %v202 = vsub.f32 %v192, 1.0
    %v203 = vsub.f32 %v194, 1.0
    %v204 = vsub.f32 %v196, 1.0
    %v205 = vsel %vm165, %v143, %v197
    %v206 = vsel %vm166, %v145, %v198
    %v207 = vsel %vm167, %v149, %v199
    %v208 = vsel %vm168, %v151, %v200
    %v209 = vsel %vm169, %v155, %v201
    %v210 = vsel %vm170, %v157, %v202
    %v211 = vsel %vm171, %v161, %v203
    %v212 = vsel %vm172, %v163, %v204
    %v213 = vld [vmem:[%s3] sm:$0xff]
    %v214 = vld [vmem:[%s3 + $0x8] sm:$0xff]
    %v215 = vld [vmem:[%s3 + $0x10] sm:$0xff]
    %v216 = vld [vmem:[%s3 + $0x18] sm:$0xff]
    %v217 = vld [vmem:[%s4] sm:$0xff]
    %v218 = vld [vmem:[%s4 + $0x8] sm:$0xff]
    %v219 = vld [vmem:[%s4 + $0x10] sm:$0xff]
    %v220 = vld [vmem:[%s4 + $0x18] sm:$0xff]
    %222 = vset.pattern.permute.xlu0 0
    %223 = vperm.xlu0 %222, %v217
    %v224 = vpop.permute.xlu0 %223
    %227 = vset.pattern.permute.xlu0 0
    %228 = vperm.xlu0 %227, %v218
    %v229 = vpop.permute.xlu0 %228
    %232 = vset.pattern.permute.xlu0 0
    %233 = vperm.xlu0 %232, %v219
    %v234 = vpop.permute.xlu0 %233
    %237 = vset.pattern.permute.xlu0 0
    %238 = vperm.xlu0 %237, %v220
    %v239 = vpop.permute.xlu0 %238
    %vm241 = vcmask 261120
    %v243 = vsel %vm241, %v213, 0
    %v246 = vsel %vm241, %v214, 0
    %v249 = vsel %vm241, %v215, 0
    %v252 = vsel %vm241, %v216, 0
    %254 = vmatprep.subr.mxu0 %v206
    %255 = vmatpush1.msra.mxu0 %v205
    %256 = vmatprep.subr.mxu0 %v208
    %257 = vmatpush1.msra.mxu0 %v207
    %258 = vmatprep.subr.mxu0 %v210
    %259 = vmatpush1.msra.mxu0 %v209
    %260 = vmatprep.subr.mxu0 %v212
    %261 = vmatpush1.msra.mxu0 %v211
    %262 = vmatprep.subr.mxu0 0.0
    %263 = vmatpush1.msra.mxu0 0.0
    %264 = vmatprep.subr.mxu0 0.0
    %265 = vmatpush1.msra.mxu0 0.0
    %266 = vmatprep.subr.mxu0 0.0
    %267 = vmatpush1.msra.mxu0 0.0
    %268 = vmatprep.subr.mxu0 0.0
    %269 = vmatpush1.msra.mxu0 0.0
    %270 = vmatprep.subr.mxu0 0.0
    %271 = vmatpush1.msra.mxu0 0.0
    %272 = vmatprep.subr.mxu0 0.0
    %273 = vmatpush1.msra.mxu0 0.0
    %274 = vmatprep.subr.mxu0 0.0
    %275 = vmatpush1.msra.mxu0 0.0
    %276 = vmatprep.subr.mxu0 0.0
    %277 = vmatpush1.msra.mxu0 0.0
    %278 = vmatprep.subr.mxu0 0.0
    %279 = vmatpush1.msra.mxu0 0.0
    %280 = vmatprep.subr.mxu0 0.0
    %281 = vmatpush1.msra.mxu0 0.0
    %282 = vmatprep.subr.mxu0 0.0
    %283 = vmatpush1.msra.mxu0 0.0
    %284 = vmatprep.subr.mxu0 0.0
    %285 = vmatpush1.msra.mxu0 0.0
    %286 = vmatprep.subr.mxu0 0.0
    %287 = vmatpush1.msra.mxu0 0.0
    %288 = vmatprep.subr.mxu0 0.0
    %289 = vmatpush1.msra.mxu0 0.0
    %290 = vmatprep.subr.mxu0 0.0
    %291 = vmatpush1.msra.mxu0 0.0
    %292 = vmatprep.subr.mxu0 0.0
    %293 = vmatpush1.msra.mxu0 0.0
    %294 = vmatprep.subr.mxu0 0.0
    %295 = vmatpush1.msra.mxu0 0.0
    %296 = vmatprep.subr.mxu0 0.0
    %297 = vmatpush1.msra.mxu0 0.0
    %298 = vmatprep.subr.mxu0 0.0
    %299 = vmatpush1.msra.mxu0 0.0
    %300 = vmatprep.subr.mxu0 0.0
    %301 = vmatpush1.msra.mxu0 0.0
    %302 = vmatprep.subr.mxu0 0.0
    %303 = vmatpush1.msra.mxu0 0.0
    %304 = vmatprep.subr.mxu0 0.0
    %305 = vmatpush1.msra.mxu0 0.0
    %306 = vmatprep.subr.mxu0 0.0
    %307 = vmatpush1.msra.mxu0 0.0
    %308 = vmatprep.subr.mxu0 0.0
    %309 = vmatpush1.msra.mxu0 0.0
    %310 = vmatprep.subr.mxu0 0.0
    %311 = vmatpush1.msra.mxu0 0.0
    %312 = vmatprep.subr.mxu0 0.0
    %313 = vmatpush1.msra.mxu0 0.0
    %314 = vmatprep.subr.mxu0 0.0
    %315 = vmatpush1.msra.mxu0 0.0
    %316 = vmatprep.subr.mxu0 0.0
    %317 = vmatpush1.msra.mxu0 0.0
    %318 = vmatprep.mubr.f32.mxu0 0.0
    %319 = vmatmul.mubr.f32.gmra.mrb[0].mxu0 %v243
    %v320 = vpop.f32.mrb[0].mxu0
    %v321 = vadd.f32 %v224, %v320
    %v322 = vpop.f32.mrb[0].mxu0
    %v323 = vadd.f32 %v224, %v322
    %324 = vmatprep.mubr.f32.mxu0 0.0
    %325 = vmatmul.mubr.f32.gmra.mrb[0].mxu0 %v246
    %v326 = vpop.f32.mrb[0].mxu0
    %v327 = vadd.f32 %v229, %v326
    %v328 = vpop.f32.mrb[0].mxu0
    %v329 = vadd.f32 %v229, %v328
    %330 = vmatprep.mubr.f32.mxu0 0.0
    %331 = vmatmul.mubr.f32.gmra.mrb[0].mxu0 %v249
    %v332 = vpop.f32.mrb[0].mxu0
    %v333 = vadd.f32 %v234, %v332
    %v334 = vpop.f32.mrb[0].mxu0
    %v335 = vadd.f32 %v234, %v334
    %336 = vmatprep.mubr.f32.mxu0 0.0
    %337 = vmatmul.mubr.f32.gmra.mrb[0].mxu0 %v252
    %v338 = vpop.f32.mrb[0].mxu0
    %v339 = vadd.f32 %v239, %v338
    %v340 = vpop.f32.mrb[0].mxu0
    %v341 = vadd.f32 %v239, %v340
    %342 = vdwg.mxu0
    %vm343 = vcmp.gt.f32.partialorder %v321, 0.0
    %vm344 = vcmp.gt.f32.partialorder %v323, 0.0
    %vm345 = vcmp.gt.f32.partialorder %v327, 0.0
    %vm346 = vcmp.gt.f32.partialorder %v329, 0.0
    %vm347 = vcmp.gt.f32.partialorder %v333, 0.0
    %vm348 = vcmp.gt.f32.partialorder %v335, 0.0
    %vm349 = vcmp.gt.f32.partialorder %v339, 0.0
    %vm350 = vcmp.gt.f32.partialorder %v341, 0.0
    %v351 = vmin.f32 %v321, 0.0
    %v352 = vmin.f32 %v323, 0.0
    %v353 = vmin.f32 %v327, 0.0
    %v354 = vmin.f32 %v329, 0.0
    %v355 = vmin.f32 %v333, 0.0
    %v356 = vmin.f32 %v335, 0.0
    %v357 = vmin.f32 %v339, 0.0
    %v358 = vmin.f32 %v341, 0.0
    %v359 = vmul.f32 %v351, 1.442695
    %v360 = vpow.pop %v359
    %v361 = vmul.f32 %v352, 1.442695
    %v362 = vpow.pop %v361
    %v363 = vmul.f32 %v353, 1.442695
    %v364 = vpow.pop %v363
    %v365 = vmul.f32 %v354, 1.442695
    %v366 = vpow.pop %v365
    %v367 = vmul.f32 %v355, 1.442695
    %v368 = vpow.pop %v367
    %v369 = vmul.f32 %v356, 1.442695
    %v370 = vpow.pop %v369
    %v371 = vmul.f32 %v357, 1.442695
    %v372 = vpow.pop %v371
    %v373 = vmul.f32 %v358, 1.442695
    %v374 = vpow.pop %v373
    %v375 = vsub.f32 %v360, 1.0
    %v376 = vsub.f32 %v362, 1.0
    %v377 = vsub.f32 %v364, 1.0
    %v378 = vsub.f32 %v366, 1.0
    %v379 = vsub.f32 %v368, 1.0
    %v380 = vsub.f32 %v370, 1.0
    %v381 = vsub.f32 %v372, 1.0
    %v382 = vsub.f32 %v374, 1.0
    %v383 = vsel %vm343, %v321, %v375
    %v384 = vsel %vm344, %v323, %v376
    %v385 = vsel %vm345, %v327, %v377
    %v386 = vsel %vm346, %v329, %v378
    %v387 = vsel %vm347, %v333, %v379
    %v388 = vsel %vm348, %v335, %v380
    %v389 = vsel %vm349, %v339, %v381
    %v390 = vsel %vm350, %v341, %v382
    %v391 = vld [vmem:[%s5] sm:$0xf]
    %v392 = vld [vmem:[%s6] sm:$0xf]
    %394 = vset.pattern.permute.xlu0 0
    %395 = vperm.xlu0 %394, %v392
    %v396 = vpop.permute.xlu0 %395
    %v399 = vsel %vm241, %v391, 0
    %401 = vmatprep.subr.mxu0 %v384
    %402 = vmatpush1.msra.mxu0 %v383
    %403 = vmatprep.subr.mxu0 %v386
    %404 = vmatpush1.msra.mxu0 %v385
    %405 = vmatprep.subr.mxu0 %v388
    %406 = vmatpush1.msra.mxu0 %v387
    %407 = vmatprep.subr.mxu0 %v390
    %408 = vmatpush1.msra.mxu0 %v389
    %409 = vmatprep.subr.mxu0 0.0
    %410 = vmatpush1.msra.mxu0 0.0
    %411 = vmatprep.subr.mxu0 0.0
    %412 = vmatpush1.msra.mxu0 0.0
    %413 = vmatprep.subr.mxu0 0.0
    %414 = vmatpush1.msra.mxu0 0.0
    %415 = vmatprep.subr.mxu0 0.0
    %416 = vmatpush1.msra.mxu0 0.0
    %417 = vmatprep.subr.mxu0 0.0
    %418 = vmatpush1.msra.mxu0 0.0
    %419 = vmatprep.subr.mxu0 0.0
    %420 = vmatpush1.msra.mxu0 0.0
    %421 = vmatprep.subr.mxu0 0.0
    %422 = vmatpush1.msra.mxu0 0.0
    %423 = vmatprep.subr.mxu0 0.0
    %424 = vmatpush1.msra.mxu0 0.0
    %425 = vmatprep.subr.mxu0 0.0
    %426 = vmatpush1.msra.mxu0 0.0
    %427 = vmatprep.subr.mxu0 0.0
    %428 = vmatpush1.msra.mxu0 0.0
    %429 = vmatprep.subr.mxu0 0.0
    %430 = vmatpush1.msra.mxu0 0.0
    %431 = vmatprep.subr.mxu0 0.0
    %432 = vmatpush1.msra.mxu0 0.0
    %433 = vmatprep.subr.mxu0 0.0
    %434 = vmatpush1.msra.mxu0 0.0
    %435 = vmatprep.subr.mxu0 0.0
    %436 = vmatpush1.msra.mxu0 0.0
    %437 = vmatprep.subr.mxu0 0.0
    %438 = vmatpush1.msra.mxu0 0.0
    %439 = vmatprep.subr.mxu0 0.0
    %440 = vmatpush1.msra.mxu0 0.0
    %441 = vmatprep.subr.mxu0 0.0
    %442 = vmatpush1.msra.mxu0 0.0
    %443 = vmatprep.subr.mxu0 0.0
    %444 = vmatpush1.msra.mxu0 0.0
    %445 = vmatprep.subr.mxu0 0.0
    %446 = vmatpush1.msra.mxu0 0.0
    %447 = vmatprep.subr.mxu0 0.0
    %448 = vmatpush1.msra.mxu0 0.0
    %449 = vmatprep.subr.mxu0 0.0
    %450 = vmatpush1.msra.mxu0 0.0
    %451 = vmatprep.subr.mxu0 0.0
    %452 = vmatpush1.msra.mxu0 0.0
    %453 = vmatprep.subr.mxu0 0.0
    %454 = vmatpush1.msra.mxu0 0.0
    %455 = vmatprep.subr.mxu0 0.0
    %456 = vmatpush1.msra.mxu0 0.0
    %457 = vmatprep.subr.mxu0 0.0
    %458 = vmatpush1.msra.mxu0 0.0
    %459 = vmatprep.subr.mxu0 0.0
    %460 = vmatpush1.msra.mxu0 0.0
    %461 = vmatprep.subr.mxu0 0.0
    %462 = vmatpush1.msra.mxu0 0.0
    %463 = vmatprep.subr.mxu0 0.0
    %464 = vmatpush1.msra.mxu0 0.0
    %465 = vmatprep.mubr.f32.mxu0 0.0
    %466 = vmatmul.mubr.f32.gmra.mrb[0].mxu0 %v399
    %v467 = vpop.f32.mrb[0].mxu0
    %v468 = vadd.f32 %v396, %v467
    %v469 = vpop.f32.mrb[0].mxu0
    %v470 = vadd.f32 %v396, %v469
    %471 = vdwg.mxu0
    %v474 = vcombine.low %v468, %v470
    %476 = vst [vmem:[#allocation2] sm:$0xff] %v474
    // Predicated region
    $region30: #{tpu_custom_call.1} parent=1 // pred_check
      _
    $region31: #{tpu_custom_call.1} parent=1 // pred_check_branch
      %478 = sbr.rel (0) target = $region33
    $region32: #{tpu_custom_call.1} parent=1 // pred_region
      %s480 = ssub.s32 128, 128
      %481 = vsyncadd [#allocation3], %s480
      %s483 = sshll.u32 [#allocation2], 4
      %s484 = int_to_ptr.vmem [resolvable:$true] %s483
      %486 = dma.vmem_to_hbm [thread:$0]  %s484, 128, %s7, [#allocation3]
    $region33: #{tpu_custom_call.1} parent=1 // pred_fallthru
      _
    // Predicated region
    $region34: #{tpu_custom_call.1} parent=1 // pred_check
      _
    $region35: #{tpu_custom_call.1} parent=1 // pred_check_branch
      %488 = sbr.rel (0) target = $region37
    $region36: #{tpu_custom_call.1} parent=1 // pred_region
      %489 = dma.done [#allocation3], 128
    $region37: #{tpu_custom_call.1} parent=1 // pred_fallthru
      _
    %490 = vsyncpa [#allocation3], 1

</llo_original>
